<compile_context>
chip_gen: v6e
topology: v6e:2x2x1
jax: 0.10.0
libtpu: 0.0.40
codegen_flags: <defaults>
</compile_context>

<pallas_src>
import functools
import math

import jax
import jax.numpy as jnp
from jax.experimental import pallas as pl
from jax.experimental.pallas import tpu as pltpu

_MiB = 1024 * 1024


def _round_up(x, m):
    return ((x + m - 1) // m) * m


def _gelu_tanh(h):
    # tanh-approx GELU matching the PyTorch GELU module (f32 math).
    c = math.sqrt(2.0 / math.pi)
    return 0.5 * h * (1.0 + jnp.tanh(c * (h + 0.044715 * (h * h * h))))


# ---------------------------------------------------------------------------
# Kernels
# ---------------------------------------------------------------------------
def _ffn_kernel_single(x_ref, w1_ref, b1_ref, w2_ref, b2_ref, o_ref, *,
                       precision):
    """Fast path: whole hidden dim in one tile -> no reduction axis, no scratch."""
    h = jnp.dot(x_ref[...], w1_ref[...],
                preferred_element_type=jnp.float32, precision=precision)
    h = _gelu_tanh(h + b1_ref[...])
    out = jnp.dot(h.astype(w2_ref.dtype), w2_ref[...],
                  preferred_element_type=jnp.float32, precision=precision)
    o_ref[...] = (out + b2_ref[...]).astype(o_ref.dtype)


def _ffn_kernel_acc(x_ref, w1_ref, b1_ref, w2_ref, b2_ref, o_ref, acc_ref, *,
                    precision):
    """General path: hidden dim tiled along the last ('arbitrary') grid axis."""
    k = pl.program_id(1)

    @pl.when(k == 0)
    def _():
        acc_ref[...] = jnp.zeros_like(acc_ref)

    # First linear (MXU, native-dtype operands, f32 accumulation) + bias tile.
    h = jnp.dot(x_ref[...], w1_ref[...],
                preferred_element_type=jnp.float32, precision=precision)
    h = _gelu_tanh(h + b1_ref[...])

    # Second linear: activation cast back to the weight dtype so the MXU runs
    # at native width; accumulate partial products in f32.
    acc_ref[...] += jnp.dot(h.astype(w2_ref.dtype), w2_ref[...],
                            preferred_element_type=jnp.float32,
                            precision=precision)

    @pl.when(k == pl.num_programs(1) - 1)
    def _():
        o_ref[...] = (acc_ref[...] + b2_ref[...]).astype(o_ref.dtype)


# ---------------------------------------------------------------------------
# Generation-aware tile selection
# ---------------------------------------------------------------------------
def _vmem_capacity_bytes():
    try:
        return int(pltpu.get_tpu_info().vmem_capacity_bytes)
    except Exception:
        return 64 * _MiB  # conservative fallback (v7x per-TC VMEM)


def _choose_tiles(M, D_pad, H, itemsize, vmem_limit):
    """Pick (tm, th). Prefer a large tm (weight arithmetic intensity ~ tm);
    under a tight VMEM budget (v7x) sacrifice th first, not tm."""
    big_vmem = vmem_limit >= 80 * _MiB
    tm_cands = (1024, 512, 256, 128) if big_vmem else (512, 256, 128)
    # Keep th >= 512 on v5e/v6e so the f32 accumulator read-modify-write stays
    # below the single vector-store slot; th=256 is acceptable on v7x.
    th_cands = (1024, 512) if big_vmem else (512, 256)
    budget = int(vmem_limit * 0.85)

    m_full = _round_up(M, 8)

    def footprint(tm, th, use_acc):
        bufs = itemsize * (tm * D_pad + D_pad * th + th * D_pad + tm * D_pad)
        bufs += 4 * 8 * (th + D_pad)          # biases (sublane-padded f32)
        fp = 2 * bufs                          # double buffering
        if use_acc:
            fp += 4 * tm * D_pad               # f32 accumulator scratch
        return fp

    def make(tm_c, th_c):
        tm = min(tm_c, m_full)
        if H <= th_c:
            return tm, H, False                # single hidden tile (fast path)
        return tm, th_c, True

    for tm_c in tm_cands:
        for th_c in th_cands:
            tm, th, use_acc = make(tm_c, th_c)
            if footprint(tm, th, use_acc) <= budget:
                return tm, th
    tm, th, _ = make(tm_cands[-1], th_cands[-1])   # fallback for huge D
    return tm, th


# ---------------------------------------------------------------------------
# Wrapper
# ---------------------------------------------------------------------------
def feed_forward(x, w1, b1, w2, b2, *, mxu_dtype=None, precision=None,
                 tm=None, th=None, vmem_limit_bytes=None):
    """x: (batch, seq, dim) -> (batch, seq, dim).

    w1: (dim, hidden), b1: (hidden,), w2: (hidden, dim), b2: (dim,).
    mxu_dtype: optionally cast x/w1/w2 (e.g. to jnp.bfloat16) at the call
      boundary for native-width MXU throughput; accumulation/GELU stay f32.
    """
    B, S, D = x.shape
    H = w1.shape[1]
    M = B * S
    out_dtype = x.dtype

    if mxu_dtype is not None:
        x = x.astype(mxu_dtype)
        w1 = w1.astype(mxu_dtype)
        w2 = w2.astype(mxu_dtype)

    itemsize = max(jnp.dtype(x.dtype).itemsize,
                   jnp.dtype(w1.dtype).itemsize,
                   jnp.dtype(w2.dtype).itemsize)

    # --- generation-aware VMEM budget --------------------------------------
    if vmem_limit_bytes is None:
        vmem_cap = _vmem_capacity_bytes()        # 128 MiB v5e/v6e, 64 MiB v7x
        vmem_limit_bytes = int(vmem_cap * 0.80)  # headroom for compiler scratch

    # --- feature-dim padding: keep all blocks lane-dense (last dim % 128) --
    D_pad = _round_up(D, 128)

    # --- tile selection ------------------------------------------------------
    tm_sel, th_sel = _choose_tiles(M, D_pad, H, itemsize, vmem_limit_bytes)
    tm = tm_sel if tm is None else tm
    tm = _round_up(min(tm, _round_up(M, 8)), 8)
    th = th_sel if th is None else th
    if th >= H:
        th, H_pad = H, H
    else:
        th = _round_up(th, 128)
        H_pad = _round_up(H, th)
    M_pad = _round_up(M, tm)

    # --- pad operands (zero padding is exact: padded hidden cols give
    #     GELU(0)=0 against zero w2 rows; padded feature cols are sliced off) -
    x2d = x.reshape(M, D)
    if (M_pad, D_pad) != (M, D):
        x2d = jnp.pad(x2d, ((0, M_pad - M), (0, D_pad - D)))
    w1p, w2p = w1, w2
    b1_2d = b1.reshape(1, H).astype(jnp.float32)
    b2_2d = b2.reshape(1, D).astype(jnp.float32)
    if (D_pad, H_pad) != (D, H):
        w1p = jnp.pad(w1, ((0, D_pad - D), (0, H_pad - H)))
        w2p = jnp.pad(w2, ((0, H_pad - H), (0, D_pad - D)))
        b1_2d = jnp.pad(b1_2d, ((0, 0), (0, H_pad - H)))
        b2_2d = jnp.pad(b2_2d, ((0, 0), (0, D_pad - D)))

    num_k = H_pad // th

    if num_k == 1:
        # Fast path: no reduction axis, no f32 scratch round-trip.
        out = pl.pallas_call(
            functools.partial(_ffn_kernel_single, precision=precision),
            out_shape=jax.ShapeDtypeStruct((M_pad, D_pad), out_dtype),
            grid_spec=pltpu.PrefetchScalarGridSpec(
                num_scalar_prefetch=0,
                grid=(M_pad // tm,),
                in_specs=[
                    pl.BlockSpec((tm, D_pad), lambda i: (i, 0)),   # x rows
                    pl.BlockSpec((D_pad, th), lambda i: (0, 0)),   # w1
                    pl.BlockSpec((1, th), lambda i: (0, 0)),       # b1
                    pl.BlockSpec((th, D_pad), lambda i: (0, 0)),   # w2
                    pl.BlockSpec((1, D_pad), lambda i: (0, 0)),    # b2
                ],
                out_specs=pl.BlockSpec((tm, D_pad), lambda i: (i, 0)),
            ),
            compiler_params=pltpu.CompilerParams(
                dimension_semantics=("parallel",),
                vmem_limit_bytes=vmem_limit_bytes,
            ),
        )(x2d, w1p, b1_2d, w2p, b2_2d)
    else:
        out = pl.pallas_call(
            functools.partial(_ffn_kernel_acc, precision=precision),
            out_shape=jax.ShapeDtypeStruct((M_pad, D_pad), out_dtype),
            grid_spec=pltpu.PrefetchScalarGridSpec(
                num_scalar_prefetch=0,
                grid=(M_pad // tm, num_k),
                in_specs=[
                    pl.BlockSpec((tm, D_pad), lambda i, k: (i, 0)),  # x rows
                    pl.BlockSpec((D_pad, th), lambda i, k: (0, k)),  # w1 tile
                    pl.BlockSpec((1, th), lambda i, k: (0, k)),      # b1 tile
                    pl.BlockSpec((th, D_pad), lambda i, k: (k, 0)),  # w2 tile
                    pl.BlockSpec((1, D_pad), lambda i, k: (0, 0)),   # b2
                ],
                out_specs=pl.BlockSpec((tm, D_pad), lambda i, k: (i, 0)),
                scratch_shapes=[pltpu.VMEM((tm, D_pad), jnp.float32)],
            ),
            compiler_params=pltpu.CompilerParams(
                dimension_semantics=("parallel", "arbitrary"),
                vmem_limit_bytes=vmem_limit_bytes,
            ),
        )(x2d, w1p, b1_2d, w2p, b2_2d)

    return out[:M, :D].reshape(B, S, D)


# ---------------------------------------------------------------------------
# Self-test
# ---------------------------------------------------------------------------
def _init_linear(key, fan_in, fan_out):
    # Matches nn.Linear default init: U(-1/sqrt(fan_in), 1/sqrt(fan_in)).
    kw, kb = jax.random.split(key)
    bound = 1.0 / math.sqrt(fan_in)
    w = jax.random.uniform(kw, (fan_in, fan_out), jnp.float32, -bound, bound)
    b = jax.random.uniform(kb, (fan_out,), jnp.float32, -bound, bound)
    return w, b


def _reference(x, w1, b1, w2, b2):
    h = x @ w1 + b1
    c = math.sqrt(2.0 / math.pi)
    h = 0.5 * h * (1.0 + jnp.tanh(c * (h + 0.044715 * h ** 3)))
    return h @ w2 + b2


if __name__ == "__main__":
    key = jax.random.PRNGKey(0)
    k_x, k_l1, k_l2 = jax.random.split(key, 3)

    batch, seq, dim, hidden = 2, 8, 32, 64
    x = jax.random.normal(k_x, (batch, seq, dim), jnp.float32)
    w1, b1 = _init_linear(k_l1, dim, hidden)
    w2, b2 = _init_linear(k_l2, hidden, dim)

    out = feed_forward(x, w1, b1, w2, b2)
    out = jax.block_until_ready(out)

    ref = _reference(x, w1, b1, w2, b2)
    assert out.shape == (batch, seq, dim)
    assert jnp.allclose(out, ref, atol=1e-5, rtol=1e-5)

    print("KERNEL_OK")
</pallas_src>

<mosaic_0001>
module attributes {stable_mosaic.version = 11 : i64} {
  func.func @_ffn_kernel_single(%arg0: i32, %arg1: memref<16x128xf32, #tpu.memory_space<vmem>>, %arg2: memref<128x64xf32, #tpu.memory_space<vmem>>, %arg3: memref<1x64xf32, #tpu.memory_space<vmem>>, %arg4: memref<64x128xf32, #tpu.memory_space<vmem>>, %arg5: memref<1x128xf32, #tpu.memory_space<vmem>>, %arg6: memref<16x128xf32, #tpu.memory_space<vmem>>) attributes {dimension_semantics = [#tpu.dimension_semantics<parallel>], iteration_bounds = array<i64: 1>, scalar_prefetch = 0 : i64, scratch_operands = 0 : i64, tpu.core_type = #tpu.core_type<tc>, window_params = [{transform_indices = @transform_0, window_bounds = array<i64: 16, 128>}, {pipeline_mode = #tpu.pipeline_mode<synchronous>, transform_indices = @transform_1, window_bounds = array<i64: 128, 64>}, {pipeline_mode = #tpu.pipeline_mode<synchronous>, transform_indices = @transform_2, window_bounds = array<i64: 1, 64>}, {pipeline_mode = #tpu.pipeline_mode<synchronous>, transform_indices = @transform_3, window_bounds = array<i64: 64, 128>}, {pipeline_mode = #tpu.pipeline_mode<synchronous>, transform_indices = @transform_4, window_bounds = array<i64: 1, 128>}, {transform_indices = @transform_5, window_bounds = array<i64: 16, 128>}]} {
    %c0 = arith.constant 0 : index
    %c0_0 = arith.constant 0 : index
    %0 = vector.load %arg1[%c0, %c0_0] : memref<16x128xf32, #tpu.memory_space<vmem>>, vector<16x128xf32>
    %c0_1 = arith.constant 0 : index
    %c0_2 = arith.constant 0 : index
    %1 = vector.load %arg2[%c0_1, %c0_2] : memref<128x64xf32, #tpu.memory_space<vmem>>, vector<128x64xf32>
    %cst = arith.constant dense<0.000000e+00> : vector<16x64xf32>
    %2 = tpu.matmul %0, %1, %cst {dimension_numbers = #tpu.dot_dimension_numbers<[1], [0], [0], [1], [0, 0, 1, 1], [], []>} : vector<16x128xf32>, vector<128x64xf32>, vector<16x64xf32> -> vector<16x64xf32>
    %c0_3 = arith.constant 0 : index
    %c0_4 = arith.constant 0 : index
    %3 = vector.load %arg3[%c0_3, %c0_4] : memref<1x64xf32, #tpu.memory_space<vmem>>, vector<1x64xf32>
    %4 = vector.broadcast %3 : vector<1x64xf32> to vector<16x64xf32>
    %5 = arith.addf %2, %4 : vector<16x64xf32>
    %cst_5 = arith.constant 5.000000e-01 : f32
    %6 = vector.broadcast %cst_5 : f32 to vector<16x64xf32>
    %7 = arith.mulf %6, %5 : vector<16x64xf32>
    %8 = arith.mulf %5, %5 : vector<16x64xf32>
    %9 = arith.mulf %8, %5 : vector<16x64xf32>
    %cst_6 = arith.constant 4.471500e-02 : f32
    %10 = vector.broadcast %cst_6 : f32 to vector<16x64xf32>
    %11 = arith.mulf %10, %9 : vector<16x64xf32>
    %12 = arith.addf %5, %11 : vector<16x64xf32>
    %cst_7 = arith.constant 0.797884583 : f32
    %13 = vector.broadcast %cst_7 : f32 to vector<16x64xf32>
    %14 = arith.mulf %13, %12 : vector<16x64xf32>
    %15 = math.tanh %14 : vector<16x64xf32>
    %cst_8 = arith.constant 1.000000e+00 : f32
    %16 = vector.broadcast %cst_8 : f32 to vector<16x64xf32>
    %17 = arith.addf %16, %15 : vector<16x64xf32>
    %18 = arith.mulf %7, %17 : vector<16x64xf32>
    %c0_9 = arith.constant 0 : index
    %c0_10 = arith.constant 0 : index
    %19 = vector.load %arg4[%c0_9, %c0_10] : memref<64x128xf32, #tpu.memory_space<vmem>>, vector<64x128xf32>
    %cst_11 = arith.constant dense<0.000000e+00> : vector<16x128xf32>
    %20 = tpu.matmul %18, %19, %cst_11 {dimension_numbers = #tpu.dot_dimension_numbers<[1], [0], [0], [1], [0, 0, 1, 1], [], []>} : vector<16x64xf32>, vector<64x128xf32>, vector<16x128xf32> -> vector<16x128xf32>
    %c0_12 = arith.constant 0 : index
    %c0_13 = arith.constant 0 : index
    %21 = vector.load %arg5[%c0_12, %c0_13] : memref<1x128xf32, #tpu.memory_space<vmem>>, vector<1x128xf32>
    %22 = vector.broadcast %21 : vector<1x128xf32> to vector<16x128xf32>
    %23 = arith.addf %20, %22 : vector<16x128xf32>
    %c0_14 = arith.constant 0 : index
    %c0_15 = arith.constant 0 : index
    %24 = vector.load %arg6[%c0_14, %c0_15] : memref<16x128xf32, #tpu.memory_space<vmem>>, vector<16x128xf32>
    tpu.vector_store %arg6[%c0_14, %c0_15], %23 {strides = array<i32>} : memref<16x128xf32, #tpu.memory_space<vmem>>, vector<16x128xf32>,
    return
  }
  func.func @transform_0(%arg0: i32) -> (i32, i32) {
    %c0_i32 = arith.constant 0 : i32
    %c0_i32_0 = arith.constant 0 : i32
    return %arg0, %c0_i32 : i32, i32
  }
  func.func @transform_1(%arg0: i32) -> (i32, i32) {
    %c0_i32 = arith.constant 0 : i32
    %c0_i32_0 = arith.constant 0 : i32
    %c0_i32_1 = arith.constant 0 : i32
    return %c0_i32, %c0_i32_0 : i32, i32
  }
  func.func @transform_2(%arg0: i32) -> (i32, i32) {
    %c0_i32 = arith.constant 0 : i32
    %c0_i32_0 = arith.constant 0 : i32
    %c0_i32_1 = arith.constant 0 : i32
    return %c0_i32, %c0_i32_0 : i32, i32
  }
  func.func @transform_3(%arg0: i32) -> (i32, i32) {
    %c0_i32 = arith.constant 0 : i32
    %c0_i32_0 = arith.constant 0 : i32
    %c0_i32_1 = arith.constant 0 : i32
    return %c0_i32, %c0_i32_0 : i32, i32
  }
  func.func @transform_4(%arg0: i32) -> (i32, i32) {
    %c0_i32 = arith.constant 0 : i32
    %c0_i32_0 = arith.constant 0 : i32
    %c0_i32_1 = arith.constant 0 : i32
    return %c0_i32, %c0_i32_0 : i32, i32
  }
  func.func @transform_5(%arg0: i32) -> (i32, i32) {
    %c0_i32 = arith.constant 0 : i32
    %c0_i32_0 = arith.constant 0 : i32
    return %arg0, %c0_i32 : i32, i32
  }
}

</mosaic_0001>

<llo_original>
// kernel: tpu_custom_call.1
$region0: #{tpu_custom_call.1}
  #allocation0 [shape = 'u32[]', space=smem, size = 0x4, offset = 0x4, fixed_abs, tag = 'smem constant byte address 0x4 - core index']
  #allocation1 [shape = 'u32[144,128]{1,0:T(1,128)}', space=vmem, size = 0x12000, scoped, tag = 'internal scratch']
  %s0 = inlined_call_operand.vmem [shape: f32[16,128], index: 0, kind: input, shape index: {}]
  %s1 = inlined_call_operand.vmem [shape: f32[128,64], index: 1, kind: input, shape index: {}]
  %s2 = inlined_call_operand.vmem [shape: f32[1,64], index: 2, kind: input, shape index: {}]
  %s3 = inlined_call_operand.vmem [shape: f32[64,128], index: 3, kind: input, shape index: {}]
  %s4 = inlined_call_operand.vmem [shape: f32[1,128], index: 4, kind: input, shape index: {}]
  %s5 = inlined_call_operand.hbm [shape: f32[16,128], index: 5, kind: output, shape index: {}]
  %s6 = sld [smem:[#allocation0]]
  $region30: #{tpu_custom_call.1} parent=0
    _
  %s8 = ssub.s32 1, %s6
  %s9 = scalar_select 0, %s8, %s6
  $region1: #{tpu_custom_call.1} parent=0
    #allocation2 [shape = 'u8[8192]{0}', space=vmem, size = 0x2000, scoped, tag = 'output window, operand 0, single buffered']
    #allocation3 [shape = 's32[1]{0}', space=sflag, size = 0x4, scoped, tag = 'scoped memory for tpu_custom_call.1']
    %10 = vsyncpa [#allocation3], 0
    // Predicated region
    $region2: #{tpu_custom_call.1} parent=1 // pred_check
      _
    $region3: #{tpu_custom_call.1} parent=1 // pred_check_branch
      %12 = sbr.rel (0) target = $region5
    $region4: #{tpu_custom_call.1} parent=1 // pred_region
      _
    $region5: #{tpu_custom_call.1} parent=1 // pred_fallthru
      _
    // Predicated region
    $region6: #{tpu_custom_call.1} parent=1 // pred_check
      _
    $region7: #{tpu_custom_call.1} parent=1 // pred_check_branch
      %14 = sbr.rel (0) target = $region9
    $region8: #{tpu_custom_call.1} parent=1 // pred_region
      _
    $region9: #{tpu_custom_call.1} parent=1 // pred_fallthru
      _
    // Predicated region
    $region10: #{tpu_custom_call.1} parent=1 // pred_check
      _
    $region11: #{tpu_custom_call.1} parent=1 // pred_check_branch
      %16 = sbr.rel (0) target = $region13
    $region12: #{tpu_custom_call.1} parent=1 // pred_region
      _
    $region13: #{tpu_custom_call.1} parent=1 // pred_fallthru
      _
    // Predicated region
    $region14: #{tpu_custom_call.1} parent=1 // pred_check
      _
    $region15: #{tpu_custom_call.1} parent=1 // pred_check_branch
      %18 = sbr.rel (0) target = $region17
    $region16: #{tpu_custom_call.1} parent=1 // pred_region
      _
    $region17: #{tpu_custom_call.1} parent=1 // pred_fallthru
      _
    // Predicated region
    $region18: #{tpu_custom_call.1} parent=1 // pred_check
      _
    $region19: #{tpu_custom_call.1} parent=1 // pred_check_branch
      %20 = sbr.rel (0) target = $region21
    $region20: #{tpu_custom_call.1} parent=1 // pred_region
      _
    $region21: #{tpu_custom_call.1} parent=1 // pred_fallthru
      _
    %v21 = vld [vmem:[%s0] sm:$0xff]
    %v22 = vld [vmem:[%s0 + $0x8] sm:$0xff]
    %v23 = vld [vmem:[%s1] sm:$0xff]
    %v24 = vld [vmem:[%s1 + $0x8] sm:$0xff]
    %v25 = vld [vmem:[%s1 + $0x10] sm:$0xff]
    %v26 = vld [vmem:[%s1 + $0x18] sm:$0xff]
    %v27 = vld [vmem:[%s1 + $0x20] sm:$0xff]
    %v28 = vld [vmem:[%s1 + $0x28] sm:$0xff]
    %v29 = vld [vmem:[%s1 + $0x30] sm:$0xff]
    %v30 = vld [vmem:[%s1 + $0x38] sm:$0xff]
    %v31 = vld [vmem:[%s1 + $0x40] sm:$0xff]
    %v32 = vld [vmem:[%s1 + $0x48] sm:$0xff]
    %v33 = vld [vmem:[%s1 + $0x50] sm:$0xff]
    %v34 = vld [vmem:[%s1 + $0x58] sm:$0xff]
    %v35 = vld [vmem:[%s1 + $0x60] sm:$0xff]
    %v36 = vld [vmem:[%s1 + $0x68] sm:$0xff]
    %v37 = vld [vmem:[%s1 + $0x70] sm:$0xff]
    %v38 = vld [vmem:[%s1 + $0x78] sm:$0xff]
    %v39 = vld [vmem:[%s2] sm:$0x1]
    %v41 = vlaneseq
    %v42 = vshrl.u32 %v41, 7
    %v43 = vsub.s32 0, %v42
    %v44 = vrot.slane %v39, %v43
    %46 = vmatprep.subr.mxu0 0.0
    %47 = vmatpush1.msra.mxu0 %v38
    %48 = vmatprep.subr.mxu0 0.0
    %49 = vmatpush1.msra.mxu0 %v37
    %50 = vmatprep.subr.mxu0 0.0
    %51 = vmatpush1.msra.mxu0 %v36
    %52 = vmatprep.subr.mxu0 0.0
    %53 = vmatpush1.msra.mxu0 %v35
    %54 = vmatprep.subr.mxu0 0.0
    %55 = vmatpush1.msra.mxu0 %v34
    %56 = vmatprep.subr.mxu0 0.0
    %57 = vmatpush1.msra.mxu0 %v33
    %58 = vmatprep.subr.mxu0 0.0
    %59 = vmatpush1.msra.mxu0 %v32
    %60 = vmatprep.subr.mxu0 0.0
    %61 = vmatpush1.msra.mxu0 %v31
    %62 = vmatprep.subr.mxu0 0.0
    %63 = vmatpush1.msra.mxu0 %v30
    %64 = vmatprep.subr.mxu0 0.0
    %65 = vmatpush1.msra.mxu0 %v29
    %66 = vmatprep.subr.mxu0 0.0
    %67 = vmatpush1.msra.mxu0 %v28
    %68 = vmatprep.subr.mxu0 0.0
    %69 = vmatpush1.msra.mxu0 %v27
    %70 = vmatprep.subr.mxu0 0.0
    %71 = vmatpush1.msra.mxu0 %v26
    %72 = vmatprep.subr.mxu0 0.0
    %73 = vmatpush1.msra.mxu0 %v25
    %74 = vmatprep.subr.mxu0 0.0
    %75 = vmatpush1.msra.mxu0 %v24
    %76 = vmatprep.subr.mxu0 0.0
    %77 = vmatpush1.msra.mxu0 %v23
    %78 = vmatprep.subr.mxu0 0.0
    %79 = vmatpush2.msra.mxu0 0.0
    %80 = vmatprep.subr.mxu0 0.0
    %81 = vmatpush2.msra.mxu0 0.0
    %82 = vmatprep.subr.mxu0 0.0
    %83 = vmatpush2.msra.mxu0 0.0
    %84 = vmatprep.subr.mxu0 0.0
    %85 = vmatpush2.msra.mxu0 0.0
    %86 = vmatprep.subr.mxu0 0.0
    %87 = vmatpush2.msra.mxu0 0.0
    %88 = vmatprep.subr.mxu0 0.0
    %89 = vmatpush2.msra.mxu0 0.0
    %90 = vmatprep.subr.mxu0 0.0
    %91 = vmatpush2.msra.mxu0 0.0
    %92 = vmatprep.subr.mxu0 0.0
    %93 = vmatpush2.msra.mxu0 0.0
    %94 = vmatprep.subr.mxu0 0.0
    %95 = vmatpush2.msra.mxu0 0.0
    %96 = vmatprep.subr.mxu0 0.0
    %97 = vmatpush2.msra.mxu0 0.0
    %98 = vmatprep.subr.mxu0 0.0
    %99 = vmatpush2.msra.mxu0 0.0
    %100 = vmatprep.subr.mxu0 0.0
    %101 = vmatpush2.msra.mxu0 0.0
    %102 = vmatprep.subr.mxu0 0.0
    %103 = vmatpush2.msra.mxu0 0.0
    %104 = vmatprep.subr.mxu0 0.0
    %105 = vmatpush2.msra.mxu0 0.0
    %106 = vmatprep.subr.mxu0 0.0
    %107 = vmatpush2.msra.mxu0 0.0
    %108 = vmatprep.subr.mxu0 0.0
    %109 = vmatpush2.msra.mxu0 0.0
    %110 = vmatprep.mubr.f32.mxu0 0.0
    %111 = vmatmul.mubr.f32.gmra.mxu0 %v21
    %v112 = vpop.f32.mrf.mxu0
    %v113 = vadd.f32 %v44, %v112
    %v114 = vpop.f32.mrf.mxu0
    %115 = vmatprep.mubr.f32.mxu0 0.0
    %116 = vmatmul.mubr.f32.gmra.mxu0 %v22
    %v117 = vpop.f32.mrf.mxu0
    %v118 = vadd.f32 %v44, %v117
    %v119 = vpop.f32.mrf.mxu0
    %120 = vdwg.mxu0
    %v121 = vmul.f32 %v113, 0.5
    %v122 = vmul.f32 %v118, 0.5
    %v123 = vmul.f32 %v113, %v113
    %v124 = vmul.f32 %v118, %v118
    %v125 = vmul.f32 %v123, %v113
    %v126 = vmul.f32 %v124, %v118
    %v127 = vmul.f32 %v125, 0.044715
    %v128 = vmul.f32 %v126, 0.044715
    %v129 = vadd.f32 %v113, %v127
    %v130 = vadd.f32 %v118, %v128
    %v131 = vmul.f32 %v129, 0.7978846
    %v132 = vmul.f32 %v130, 0.7978846
    %v133 = vtanh.pop %v131
    %v134 = vtanh.pop %v132
    %v135 = vadd.f32 %v133, 1.0
    %v136 = vadd.f32 %v134, 1.0
    %v137 = vmul.f32 %v121, %v135
    %v138 = vmul.f32 %v122, %v136
    %v139 = vld [vmem:[%s3] sm:$0xff]
    %v140 = vld [vmem:[%s3 + $0x8] sm:$0xff]
    %v141 = vld [vmem:[%s3 + $0x10] sm:$0xff]
    %v142 = vld [vmem:[%s3 + $0x18] sm:$0xff]
    %v143 = vld [vmem:[%s3 + $0x20] sm:$0xff]
    %v144 = vld [vmem:[%s3 + $0x28] sm:$0xff]
    %v145 = vld [vmem:[%s3 + $0x30] sm:$0xff]
    %v146 = vld [vmem:[%s3 + $0x38] sm:$0xff]
    %v147 = vld [vmem:[%s4] sm:$0x1]
    %v149 = vlaneseq
    %v150 = vshrl.u32 %v149, 7
    %v151 = vsub.s32 0, %v150
    %v152 = vrot.slane %v147, %v151
    %vm154 = vcmask 523264
    %v156 = vsel %vm154, %v137, 0
    %v159 = vsel %vm154, %v138, 0
    %161 = vmatprep.subr.mxu0 0.0
    %162 = vmatpush1.msra.mxu0 0.0
    %163 = vmatprep.subr.mxu0 0.0
    %164 = vmatpush1.msra.mxu0 0.0
    %165 = vmatprep.subr.mxu0 0.0
    %166 = vmatpush1.msra.mxu0 0.0
    %167 = vmatprep.subr.mxu0 0.0
    %168 = vmatpush1.msra.mxu0 0.0
    %169 = vmatprep.subr.mxu0 0.0
    %170 = vmatpush1.msra.mxu0 0.0
    %171 = vmatprep.subr.mxu0 0.0
    %172 = vmatpush1.msra.mxu0 0.0
    %173 = vmatprep.subr.mxu0 0.0
    %174 = vmatpush1.msra.mxu0 0.0
    %175 = vmatprep.subr.mxu0 0.0
    %176 = vmatpush1.msra.mxu0 0.0
    %177 = vmatprep.subr.mxu0 0.0
    %178 = vmatpush1.msra.mxu0 %v146
    %179 = vmatprep.subr.mxu0 0.0
    %180 = vmatpush1.msra.mxu0 %v145
    %181 = vmatprep.subr.mxu0 0.0
    %182 = vmatpush1.msra.mxu0 %v144
    %183 = vmatprep.subr.mxu0 0.0
    %184 = vmatpush1.msra.mxu0 %v143
    %185 = vmatprep.subr.mxu0 0.0
    %186 = vmatpush1.msra.mxu0 %v142
    %187 = vmatprep.subr.mxu0 0.0
    %188 = vmatpush1.msra.mxu0 %v141
    %189 = vmatprep.subr.mxu0 0.0
    %190 = vmatpush1.msra.mxu0 %v140
    %191 = vmatprep.subr.mxu0 0.0
    %192 = vmatpush1.msra.mxu0 %v139
    %193 = vmatprep.subr.mxu0 0.0
    %194 = vmatpush2.msra.mxu0 0.0
    %195 = vmatprep.subr.mxu0 0.0
    %196 = vmatpush2.msra.mxu0 0.0
    %197 = vmatprep.subr.mxu0 0.0
    %198 = vmatpush2.msra.mxu0 0.0
    %199 = vmatprep.subr.mxu0 0.0
    %200 = vmatpush2.msra.mxu0 0.0
    %201 = vmatprep.subr.mxu0 0.0
    %202 = vmatpush2.msra.mxu0 0.0
    %203 = vmatprep.subr.mxu0 0.0
    %204 = vmatpush2.msra.mxu0 0.0
    %205 = vmatprep.subr.mxu0 0.0
    %206 = vmatpush2.msra.mxu0 0.0
    %207 = vmatprep.subr.mxu0 0.0
    %208 = vmatpush2.msra.mxu0 0.0
    %209 = vmatprep.subr.mxu0 0.0
    %210 = vmatpush2.msra.mxu0 0.0
    %211 = vmatprep.subr.mxu0 0.0
    %212 = vmatpush2.msra.mxu0 0.0
    %213 = vmatprep.subr.mxu0 0.0
    %214 = vmatpush2.msra.mxu0 0.0
    %215 = vmatprep.subr.mxu0 0.0
    %216 = vmatpush2.msra.mxu0 0.0
    %217 = vmatprep.subr.mxu0 0.0
    %218 = vmatpush2.msra.mxu0 0.0
    %219 = vmatprep.subr.mxu0 0.0
    %220 = vmatpush2.msra.mxu0 0.0
    %221 = vmatprep.subr.mxu0 0.0
    %222 = vmatpush2.msra.mxu0 0.0
    %223 = vmatprep.subr.mxu0 0.0
    %224 = vmatpush2.msra.mxu0 0.0
    %225 = vmatprep.mubr.f32.mxu0 0.0
    %226 = vmatmul.mubr.f32.gmra.mxu0 %v156
    %v227 = vpop.f32.mrf.mxu0
    %v228 = vadd.f32 %v152, %v227
    %v229 = vpop.f32.mrf.mxu0
    %230 = vmatprep.mubr.f32.mxu0 0.0
    %231 = vmatmul.mubr.f32.gmra.mxu0 %v159
    %v232 = vpop.f32.mrf.mxu0
    %v233 = vadd.f32 %v152, %v232
    %v234 = vpop.f32.mrf.mxu0
    %235 = vdwg.mxu0
    %236 = vst [vmem:[#allocation2] sm:$0xff] %v228
    %237 = vst [vmem:[#allocation2 + $0x8] sm:$0xff] %v233
    // Predicated region
    $region22: #{tpu_custom_call.1} parent=1 // pred_check
      _
    $region23: #{tpu_custom_call.1} parent=1 // pred_check_branch
      %239 = sbr.rel (0) target = $region25
    $region24: #{tpu_custom_call.1} parent=1 // pred_region
      %s241 = ssub.s32 256, 256
      %242 = vsyncadd [#allocation3], %s241
      %s243 = sshll.u32 [#allocation2], 4
      %s244 = int_to_ptr.vmem [resolvable:$true] %s243
      %249 = dma.vmem_to_hbm [thread:$0]  %s244, 256, %s5, [#allocation3], 128, 128, 8
    $region25: #{tpu_custom_call.1} parent=1 // pred_fallthru
      _
    // Predicated region
    $region26: #{tpu_custom_call.1} parent=1 // pred_check
      _
    $region27: #{tpu_custom_call.1} parent=1 // pred_check_branch
      %251 = sbr.rel (0) target = $region29
    $region28: #{tpu_custom_call.1} parent=1 // pred_region
      %252 = dma.done [#allocation3], 256
    $region29: #{tpu_custom_call.1} parent=1 // pred_fallthru
      _
    %253 = vsyncpa [#allocation3], 1

</llo_original>
